<compile_context>
chip_gen: v5e
topology: v5e:2x2
jax: 0.10.0
libtpu: 0.0.40
codegen_flags: <defaults>
</compile_context>

<pallas_src>
import jax
import jax.numpy as jnp
from jax import lax
from jax.experimental import pallas as pl
from jax.experimental.pallas import tpu as pltpu


def _td_conv_kernel(x_ref, w_ref, b_ref, o_ref):
    # x_ref: (TILE_N, H_pad, k_dim)     bf16  padded NHWC frames, lanes = (W_pad, C_in)
    # w_ref: (KH, k_dim, n_lanes)       bf16  banded weight (VMEM-resident)
    # b_ref: (1, n_lanes)               f32   bias tiled along W (zero-padded)
    # o_ref: (TILE_N, H, n_lanes)       out dtype, lane-dense last dim
    tile_n = x_ref.shape[0]
    kh, k_dim, n_lanes = w_ref.shape
    h_out = o_ref.shape[1]
    m = tile_n * h_out

    # One big-M matmul per kernel row: M = TILE_N*H keeps the MXU rows full and
    # the KH accumulating dots pipeline cleanly (in-place accumulate on v7x MRB).
    acc = jnp.zeros((m, n_lanes), jnp.float32)
    for dy in range(kh):                               # static unroll, KH is small
        lhs = x_ref[:, dy:dy + h_out, :].reshape(m, k_dim)
        acc = acc + jnp.dot(lhs, w_ref[dy], preferred_element_type=jnp.float32)
    acc = acc + b_ref[...]                             # bias added once, broadcast row
    o_ref[...] = acc.reshape(tile_n, h_out, n_lanes).astype(o_ref.dtype)


def time_distributed_conv2d(x, w, b, batch_first=True, *,
                            out_dtype=jnp.bfloat16,
                            channels_last_output=False):
    """TimeDistributed(Conv2d(C_in, C_out, (KH, KW), padding='same')) forward.

    x: (d0, d1, C_in, H, W) float32   (per-frame NCHW, PyTorch layout)
    w: (C_out, C_in, KH, KW)          (PyTorch OIHW)
    b: (C_out,)
    Returns (d0, d1, C_out, H, W), mirroring the two .view() branches of the
    PyTorch module (or (..., H, W, C_out) when channels_last_output=True).

    NOTE: the PyTorch module applies self.module directly when x.ndim <= 2; a
    Conv2d inner module needs rank-4 frames, so only the rank-5 path is
    implemented.  stride=1, dilation=1, groups=1 are assumed.
    """
    d0, d1, C, H, W = x.shape
    C_out, C_in, KH, KW = w.shape
    assert C_in == C, (C_in, C)
    # TODO(synk): even kernels need PyTorch-style asymmetric 'same' padding.
    assert KH % 2 == 1 and KW % 2 == 1, "only odd kernel sizes supported"
    ph, pw = KH // 2, KW // 2

    N = d0 * d1
    H_pad, W_pad = H + 2 * ph, W + 2 * pw
    k_dim = W_pad * C                               # matmul contraction dim
    n_out = W * C_out                               # logical fused output dim
    n_out_pad = ((n_out + 127) // 128) * 128        # lane-dense (unmasked) stores
    out_dtype = jnp.dtype(out_dtype)

    # ---- VMEM-budgeted frame tile (big tiles, explicit limit) ----------------
    weight_bytes = KH * k_dim * n_out_pad * 2                       # bf16, resident
    per_frame = (2 * H_pad * k_dim * 2                              # x block x2 bufs
                 + 2 * H * n_out_pad * out_dtype.itemsize           # out block x2 bufs
                 + H * n_out_pad * 4                                # f32 accumulator
                 + 2 * H * k_dim * 2)                               # shifted-LHS temps
    vmem_budget = 32 * 1024 * 1024                  # target usage; limit set to 48 MiB
    if 2 * weight_bytes + per_frame > vmem_budget:
        # TODO(synk): K-axis tiling of the banded weight (+ pl.Buffered(1) on the
        # invariant weight spec) for configs overflowing v7x's 64 MiB VMEM.
        raise NotImplementedError("banded weight too large for resident-VMEM path")
    tile_cap = min(512, max(1, (vmem_budget - 2 * weight_bytes) // per_frame))
    # >= 2 grid steps when N > 1 so the 'parallel' axis load-balances v7x's 2 TCs.
    tile_n = min(tile_cap, pl.cdiv(N, 2)) if N > 1 else 1
    n_tiles = pl.cdiv(N, tile_n)
    n_padded = n_tiles * tile_n

    # ---- TimeDistributed flatten (-1, C, H, W); bf16 cast BEFORE the transpose,
    # one pad for the spatial halo + frame round-up, fuse (W_pad, C_in) lanes.
    x_nhwc = jnp.transpose(x.astype(jnp.bfloat16).reshape(N, C, H, W), (0, 2, 3, 1))
    x_p = jnp.pad(x_nhwc, ((0, n_padded - N), (ph, ph), (pw, pw), (0, 0)))
    x_p = x_p.reshape(n_padded, H_pad, k_dim)

    # ---- Banded weight: band[dy, p*C + c, q*C_out + co] = w[co, c, dy, p - q]
    # for 0 <= p - q < KW (zero elsewhere).  Fuses the (dx, c) part of im2col
    # into the matmul so no patch tensor ever touches HBM.
    w_k = jnp.transpose(w, (2, 3, 1, 0)).astype(jnp.float32)        # (KH, KW, C, C_out)
    w_band = jnp.zeros((KH, W_pad, C, W, C_out), jnp.float32)
    for dx in range(KW):
        eye = jnp.eye(W_pad, W, k=-dx, dtype=jnp.float32)           # p == q + dx
        w_band = w_band + jnp.einsum('pq,kco->kpcqo', eye, w_k[:, dx])
    w_band = w_band.reshape(KH, k_dim, n_out)
    bias_row = jnp.tile(b.astype(jnp.float32), W).reshape(1, n_out)
    if n_out_pad != n_out:                          # pad fused (W, C_out) dim to 128k
        w_band = jnp.pad(w_band, ((0, 0), (0, 0), (0, n_out_pad - n_out)))
        bias_row = jnp.pad(bias_row, ((0, 0), (0, n_out_pad - n_out)))
    w_band = w_band.astype(jnp.bfloat16)

    y = pl.pallas_call(
        _td_conv_kernel,
        out_shape=jax.ShapeDtypeStruct((n_padded, H, n_out_pad), out_dtype),
        grid_spec=pltpu.PrefetchScalarGridSpec(
            num_scalar_prefetch=0,
            grid=(n_tiles,),
            in_specs=[
                pl.BlockSpec((tile_n, H_pad, k_dim), lambda i: (i, 0, 0)),   # frames
                pl.BlockSpec((KH, k_dim, n_out_pad), lambda i: (0, 0, 0)),   # weight
                pl.BlockSpec((1, n_out_pad), lambda i: (0, 0)),              # bias row
            ],
            out_specs=pl.BlockSpec((tile_n, H, n_out_pad), lambda i: (i, 0, 0)),
        ),
        compiler_params=pltpu.CompilerParams(
            dimension_semantics=("parallel",),
            vmem_limit_bytes=48 * 1024 * 1024),
    )(x_p, w_band, bias_row)

    # Drop frame/lane padding, then the TimeDistributed un-flatten.
    y = y[:N, :, :n_out].reshape(N, H, W, C_out)
    if channels_last_output:
        frame_shape = (H, W, C_out)
    else:
        y = jnp.transpose(y, (0, 3, 1, 2))                          # NHWC -> NCHW
        frame_shape = (C_out, H, W)
    if batch_first:
        return y.reshape(d0, -1, *frame_shape)      # y.view(x.size(0), -1, *y.shape[1:])
    return y.reshape(-1, d1, *frame_shape)          # y.view(-1, x.size(1), *y.shape[1:])


if __name__ == "__main__":
    # Small deterministic setup: B=2, T=3, C_in=4, H=W=16, C_out=8, 3x3 conv.
    B, T, C_in, H, W = 2, 3, 4, 16, 16
    C_out, KH, KW = 8, 3, 3

    key = jax.random.PRNGKey(0)
    kx, kw, kb = jax.random.split(key, 3)
    x = jax.random.normal(kx, (B, T, C_in, H, W), dtype=jnp.float32)
    w = jax.random.normal(kw, (C_out, C_in, KH, KW), dtype=jnp.float32) * 0.1
    b = jax.random.normal(kb, (C_out,), dtype=jnp.float32) * 0.1

    y = jax.block_until_ready(time_distributed_conv2d(x, w, b, batch_first=True))
    assert y.shape == (B, T, C_out, H, W), y.shape
    y = y.astype(jnp.float32)

    def conv_ref(xx, ww):
        out = lax.conv_general_dilated(
            xx.reshape(B * T, C_in, H, W), ww, window_strides=(1, 1),
            padding="SAME", dimension_numbers=("NCHW", "OIHW", "NCHW"),
            precision=lax.Precision.HIGHEST)
        return (out + b.reshape(1, C_out, 1, 1)).reshape(B, T, C_out, H, W)

    # (a) Kernel numerics: f32 reference on the same bf16-rounded operands
    #     (bf16 MXU products are exact; only the bf16 output rounding remains).
    y_ref_bf16in = conv_ref(x.astype(jnp.bfloat16).astype(jnp.float32),
                            w.astype(jnp.bfloat16).astype(jnp.float32))
    err_a = float(jnp.max(jnp.abs(y - y_ref_bf16in)))
    assert err_a < 2e-2, err_a

    # (b) Mixed-precision drift vs the true f32 PyTorch Conv2d (bf16 in/out).
    #     Use out_dtype=jnp.float32 / f32 operands if tighter parity is required.
    y_ref_f32 = conv_ref(x, w)
    err_b = float(jnp.max(jnp.abs(y - y_ref_f32)))
    assert err_b < 1.2e-1, err_b

    print("KERNEL_OK")
</pallas_src>

<mosaic_0001>
module attributes {stable_mosaic.version = 11 : i64} {
  func.func @_td_conv_kernel(%arg0: i32, %arg1: memref<3x18x72xbf16, #tpu.memory_space<vmem>>, %arg2: memref<3x72x128xbf16, #tpu.memory_space<vmem>>, %arg3: memref<1x128xf32, #tpu.memory_space<vmem>>, %arg4: memref<3x16x128xbf16, #tpu.memory_space<vmem>>) attributes {dimension_semantics = [#tpu.dimension_semantics<parallel>], iteration_bounds = array<i64: 2>, scalar_prefetch = 0 : i64, scratch_operands = 0 : i64, tpu.core_type = #tpu.core_type<tc>, window_params = [{transform_indices = @transform_0, window_bounds = array<i64: 3, 18, 72>}, {pipeline_mode = #tpu.pipeline_mode<synchronous>, transform_indices = @transform_1, window_bounds = array<i64: 3, 72, 128>}, {pipeline_mode = #tpu.pipeline_mode<synchronous>, transform_indices = @transform_2, window_bounds = array<i64: 1, 128>}, {transform_indices = @transform_3, window_bounds = array<i64: 3, 16, 128>}]} {
    %cst = arith.constant 0.000000e+00 : f32
    %0 = vector.broadcast %cst : f32 to vector<48x128xf32>
    %c0 = arith.constant 0 : index
    %c0_0 = arith.constant 0 : index
    %c0_1 = arith.constant 0 : index
    %1 = vector.load %arg1[%c0, %c0_0, %c0_1] : memref<3x18x72xbf16, #tpu.memory_space<vmem>>, vector<3x16x72xbf16>
    %2 = vector.shape_cast %1 : vector<3x16x72xbf16> to vector<48x72xbf16>
    %c0_2 = arith.constant 0 : index
    %c0_3 = arith.constant 0 : index
    %c0_4 = arith.constant 0 : index
    %3 = vector.load %arg2[%c0_2, %c0_3, %c0_4] : memref<3x72x128xbf16, #tpu.memory_space<vmem>>, vector<1x72x128xbf16>
    %4 = vector.shape_cast %3 : vector<1x72x128xbf16> to vector<72x128xbf16>
    %cst_5 = arith.constant dense<0.000000e+00> : vector<48x128xf32>
    %5 = tpu.matmul %2, %4, %cst_5 {dimension_numbers = #tpu.dot_dimension_numbers<[1], [0], [0], [1], [0, 0, 1, 1], [], []>} : vector<48x72xbf16>, vector<72x128xbf16>, vector<48x128xf32> -> vector<48x128xf32>
    %6 = arith.addf %0, %5 : vector<48x128xf32>
    %c0_6 = arith.constant 0 : index
    %c1 = arith.constant 1 : index
    %c0_7 = arith.constant 0 : index
    %7 = vector.load %arg1[%c0_6, %c1, %c0_7] : memref<3x18x72xbf16, #tpu.memory_space<vmem>>, vector<3x16x72xbf16>
    %8 = vector.shape_cast %7 : vector<3x16x72xbf16> to vector<48x72xbf16>
    %c1_8 = arith.constant 1 : index
    %c0_9 = arith.constant 0 : index
    %c0_10 = arith.constant 0 : index
    %9 = vector.load %arg2[%c1_8, %c0_9, %c0_10] : memref<3x72x128xbf16, #tpu.memory_space<vmem>>, vector<1x72x128xbf16>
    %10 = vector.shape_cast %9 : vector<1x72x128xbf16> to vector<72x128xbf16>
    %cst_11 = arith.constant dense<0.000000e+00> : vector<48x128xf32>
    %11 = tpu.matmul %8, %10, %cst_11 {dimension_numbers = #tpu.dot_dimension_numbers<[1], [0], [0], [1], [0, 0, 1, 1], [], []>} : vector<48x72xbf16>, vector<72x128xbf16>, vector<48x128xf32> -> vector<48x128xf32>
    %12 = arith.addf %6, %11 : vector<48x128xf32>
    %c0_12 = arith.constant 0 : index
    %c2 = arith.constant 2 : index
    %c0_13 = arith.constant 0 : index
    %13 = vector.load %arg1[%c0_12, %c2, %c0_13] : memref<3x18x72xbf16, #tpu.memory_space<vmem>>, vector<3x16x72xbf16>
    %14 = vector.shape_cast %13 : vector<3x16x72xbf16> to vector<48x72xbf16>
    %c2_14 = arith.constant 2 : index
    %c0_15 = arith.constant 0 : index
    %c0_16 = arith.constant 0 : index
    %15 = vector.load %arg2[%c2_14, %c0_15, %c0_16] : memref<3x72x128xbf16, #tpu.memory_space<vmem>>, vector<1x72x128xbf16>
    %16 = vector.shape_cast %15 : vector<1x72x128xbf16> to vector<72x128xbf16>
    %cst_17 = arith.constant dense<0.000000e+00> : vector<48x128xf32>
    %17 = tpu.matmul %14, %16, %cst_17 {dimension_numbers = #tpu.dot_dimension_numbers<[1], [0], [0], [1], [0, 0, 1, 1], [], []>} : vector<48x72xbf16>, vector<72x128xbf16>, vector<48x128xf32> -> vector<48x128xf32>
    %18 = arith.addf %12, %17 : vector<48x128xf32>
    %c0_18 = arith.constant 0 : index
    %c0_19 = arith.constant 0 : index
    %19 = vector.load %arg3[%c0_18, %c0_19] : memref<1x128xf32, #tpu.memory_space<vmem>>, vector<1x128xf32>
    %20 = vector.broadcast %19 : vector<1x128xf32> to vector<48x128xf32>
    %21 = arith.addf %18, %20 : vector<48x128xf32>
    %22 = vector.shape_cast %21 : vector<48x128xf32> to vector<3x16x128xf32>
    %23 = arith.truncf %22 : vector<3x16x128xf32> to vector<3x16x128xbf16>
    %c0_20 = arith.constant 0 : index
    %c0_21 = arith.constant 0 : index
    %c0_22 = arith.constant 0 : index
    %24 = vector.load %arg4[%c0_20, %c0_21, %c0_22] : memref<3x16x128xbf16, #tpu.memory_space<vmem>>, vector<3x16x128xbf16>
    tpu.vector_store %arg4[%c0_20, %c0_21, %c0_22], %23 {strides = array<i32>} : memref<3x16x128xbf16, #tpu.memory_space<vmem>>, vector<3x16x128xbf16>,
    return
  }
  func.func @transform_0(%arg0: i32) -> (i32, i32, i32) {
    %c0_i32 = arith.constant 0 : i32
    %c0_i32_0 = arith.constant 0 : i32
    %c0_i32_1 = arith.constant 0 : i32
    return %arg0, %c0_i32, %c0_i32_0 : i32, i32, i32
  }
  func.func @transform_1(%arg0: i32) -> (i32, i32, i32) {
    %c0_i32 = arith.constant 0 : i32
    %c0_i32_0 = arith.constant 0 : i32
    %c0_i32_1 = arith.constant 0 : i32
    %c0_i32_2 = arith.constant 0 : i32
    return %c0_i32, %c0_i32_0, %c0_i32_1 : i32, i32, i32
  }
  func.func @transform_2(%arg0: i32) -> (i32, i32) {
    %c0_i32 = arith.constant 0 : i32
    %c0_i32_0 = arith.constant 0 : i32
    %c0_i32_1 = arith.constant 0 : i32
    return %c0_i32, %c0_i32_0 : i32, i32
  }
  func.func @transform_3(%arg0: i32) -> (i32, i32, i32) {
    %c0_i32 = arith.constant 0 : i32
    %c0_i32_0 = arith.constant 0 : i32
    %c0_i32_1 = arith.constant 0 : i32
    return %arg0, %c0_i32, %c0_i32_0 : i32, i32, i32
  }
}

</mosaic_0001>

<llo_original>
// kernel: tpu_custom_call.1
$region0: #{tpu_custom_call.1}
  #allocation0 [shape = 'u32[]', space=smem, size = 0x4, offset = 0x4, fixed_abs, tag = 'smem constant byte address 0x4 - core index']
  #allocation1 [shape = 'u32[72,128]{1,0:T(1,128)}', space=vmem, size = 0x9000, scoped, tag = 'internal scratch']
  %s0 = inlined_call_operand.hbm [shape: bf16[6,18,72], index: 0, kind: input, shape index: {}]
  %s1 = inlined_call_operand.hbm [shape: bf16[3,72,128], index: 1, kind: input, shape index: {}]
  %s2 = inlined_call_operand.vmem [shape: f32[1,128], index: 2, kind: input, shape index: {}]
  %s3 = inlined_call_operand.hbm [shape: bf16[6,16,128], index: 3, kind: output, shape index: {}]
  %s4 = sld [smem:[#allocation0]]
  $region53: #{tpu_custom_call.1} parent=0
    _
  %s6 = ssub.s32 1, %s4
  %s7 = scalar_select 0, %s6, %s4
  $region1: #{tpu_custom_call.1} parent=0
    #allocation2 [shape = 'u8[36864]{0}', space=vmem, size = 0x9000, scoped, tag = 'input window, operand 0']
    #allocation3 [shape = 's32[2]{0}', space=sflag, size = 0x8, scoped, tag = 'scoped memory for tpu_custom_call.1']
    #allocation4 [shape = 's32[2]{0}', space=sflag, size = 0x8, scoped, tag = 'scoped memory for tpu_custom_call.1']
    #allocation5 [shape = 'u8[55296]{0}', space=vmem, size = 0xd800, scoped, tag = 'input window, operand 1, single buffered']
    #allocation6 [shape = 's32[1]{0}', space=sflag, size = 0x4, scoped, tag = 'scoped memory for tpu_custom_call.1']
    #allocation7 [shape = 'u8[24576]{0}', space=vmem, size = 0x6000, scoped, tag = 'output window, operand 0']
    %8 = vsyncpa [#allocation3], 0
    %s9 = scalar_lea.sflag [#allocation3], 1
    %10 = vsyncpa %s9, 0
    %11 = vsyncpa [#allocation6], 0
    %12 = vsyncpa [#allocation4], 0
    %s13 = scalar_lea.sflag [#allocation4], 1
    %14 = vsyncpa %s13, 0
    loop: start=0, step=1, limit=4
    $region2: #{tpu_custom_call.1} parent=1 // loop_pre_header
      _
    $region3: #{tpu_custom_call.1} parent=1 // loop_header
      %s16 = sphi 0, %s20
      %p17 = scmp.ge.s32.totalorder %s16, 4
      %s26 = sphi 0, %s28
      %s29 = sphi 0, %s26
      %s30 = sphi 0, %s29
      %s46 = sphi 0, %s30
      %s50 = sphi 0, %s50
      %s52 = sphi 0, %s50
      %s53 = sphi 0, %s52
      %s67 = sphi 0, %s53
      %s71 = sphi 0, %s71
      %s73 = sphi 0, %s71
      %s74 = sphi 0, %s73
      %s88 = sphi 0, %s74
      %s94 = sphi 0, %s96
      %s97 = sphi 0, %s94
      %s98 = sphi 0, %s97
      %s114 = sphi 0, %s98
    $region4: #{tpu_custom_call.1} parent=1 // loop_header_branch
      %19 = sbr.rel (%p17) target = $region8
    $region5: #{tpu_custom_call.1} parent=1 // loop_body
      %s21 = ssub.s32 %s16, 1
      %s22 = ssub.s32 %s16, 2
      %s23 = sadd.s32 %s16, 1
      %s24 = ssub.s32 %s16, %s23
      %p25 = scmp.eq.s32.totalorder %s24, 0
      %s27 = sadd.s32 %s26, 1
      %s28 = scalar_select %p25, %s26, %s27
      %p31 = pneg %p25
      %p32 = scmp.eq.s32.totalorder %s16, 1
      %p33 = por %p31, %p32
      %p34 = scmp.ne.s32.totalorder %s26, %s29
      %p35 = scmp.eq.s32.totalorder %s16, 0
      %p36 = por %p34, %p35
      %p37 = scmp.ne.s32.totalorder %s26, %s29
      %p38 = scmp.eq.s32.totalorder %s21, 1
      %p39 = por %p37, %p38
      %p40 = scmp.ne.s32.totalorder %s29, %s30
      %p41 = scmp.eq.s32.totalorder %s21, 0
      %p42 = por %p40, %p41
      %p43 = scmp.ne.s32.totalorder %s29, %s30
      %p44 = scmp.eq.s32.totalorder %s22, 1
      %p45 = por %p43, %p44
      %p47 = scmp.ne.s32.totalorder %s30, %s46
      %p48 = scmp.eq.s32.totalorder %s22, 0
      %p49 = por %p47, %p48
      %s51 = sadd.s32 %s50, 1
      %p54 = scmp.eq.s32.totalorder %s16, 1
      %p55 = scmp.ne.s32.totalorder %s50, %s52
      %p56 = scmp.eq.s32.totalorder %s16, 0
      %p57 = por %p55, %p56
      %p58 = scmp.ne.s32.totalorder %s50, %s52
      %p59 = scmp.eq.s32.totalorder %s21, 1
      %p60 = por %p58, %p59
      %p61 = scmp.ne.s32.totalorder %s52, %s53
      %p62 = scmp.eq.s32.totalorder %s21, 0
      %p63 = por %p61, %p62
      %p64 = scmp.ne.s32.totalorder %s52, %s53
      %p65 = scmp.eq.s32.totalorder %s22, 1
      %p66 = por %p64, %p65
      %p68 = scmp.ne.s32.totalorder %s53, %s67
      %p69 = scmp.eq.s32.totalorder %s22, 0
      %p70 = por %p68, %p69
      %s72 = sadd.s32 %s71, 1
      %p75 = scmp.eq.s32.totalorder %s16, 1
      %p76 = scmp.ne.s32.totalorder %s71, %s73
      %p77 = scmp.eq.s32.totalorder %s16, 0
      %p78 = por %p76, %p77
      %p79 = scmp.ne.s32.totalorder %s71, %s73
      %p80 = scmp.eq.s32.totalorder %s21, 1
      %p81 = por %p79, %p80
      %p82 = scmp.ne.s32.totalorder %s73, %s74
      %p83 = scmp.eq.s32.totalorder %s21, 0
      %p84 = por %p82, %p83
      %p85 = scmp.ne.s32.totalorder %s73, %s74
      %p86 = scmp.eq.s32.totalorder %s22, 1
      %p87 = por %p85, %p86
      %p89 = scmp.ne.s32.totalorder %s74, %s88
      %p90 = scmp.eq.s32.totalorder %s22, 0
      %p91 = por %p89, %p90
      %s92 = ssub.s32 %s16, %s23
      %p93 = scmp.eq.s32.totalorder %s92, 0
      %s95 = sadd.s32 %s94, 1
      %s96 = scalar_select %p93, %s94, %s95
      %p99 = pneg %p93
      %p100 = scmp.eq.s32.totalorder %s16, 1
      %p101 = por %p99, %p100
      %p102 = scmp.ne.s32.totalorder %s94, %s97
      %p103 = scmp.eq.s32.totalorder %s16, 0
      %p104 = por %p102, %p103
      %p105 = scmp.ne.s32.totalorder %s94, %s97
      %p106 = scmp.eq.s32.totalorder %s21, 1
      %p107 = por %p105, %p106
      %p108 = scmp.ne.s32.totalorder %s97, %s98
      %p109 = scmp.eq.s32.totalorder %s21, 0
      %p110 = por %p108, %p109
      %p111 = scmp.ne.s32.totalorder %s97, %s98
      %p112 = scmp.eq.s32.totalorder %s22, 1
      %p113 = por %p111, %p112
      %p115 = scmp.ne.s32.totalorder %s98, %s114
      %p116 = scmp.eq.s32.totalorder %s22, 0
      %p117 = por %p115, %p116
      %p118 = scmp.le.s32.totalorder 1, %s16
      %p119 = scmp.lt.s32.totalorder %s16, 3
      %p120 = pnand %p118, %p119
      %p121 = pneg %p120
      // Predicated region
      $region9: #{tpu_custom_call.1} parent=5 // pred_check
        _
      $region10: #{tpu_custom_call.1} parent=5 // pred_check_branch
        %123 = sbr.rel (%p120) target = $region12
      $region11: #{tpu_custom_call.1} parent=5 // pred_region
        %s124 = ssub.s32 %s16, 1
        // Predicated region
        $region13: #{tpu_custom_call.1} parent=11 // pred_check
          %p125 = pneg %p63
        $region14: #{tpu_custom_call.1} parent=11 // pred_check_branch
          %127 = sbr.rel (%p125) target = $region16
        $region15: #{tpu_custom_call.1} parent=11 // pred_region
          %129 = vsyncadd [#allocation6], 0
          %s130 = sshll.u32 %s1, 4
          %s131 = int_to_ptr.hbm [resolvable:$true] %s130
          %s132 = sshll.u32 [#allocation5], 4
          %s133 = int_to_ptr.vmem [resolvable:$true] %s132
          %138 = dma.hbm_to_vmem [thread:$0]  %s131, 1728, %s133, [#allocation6], 64, 64, 4
        $region16: #{tpu_custom_call.1} parent=11 // pred_fallthru
          _
        // Predicated region
        $region17: #{tpu_custom_call.1} parent=11 // pred_check
          %p139 = pneg %p84
        $region18: #{tpu_custom_call.1} parent=11 // pred_check_branch
          %141 = sbr.rel (%p139) target = $region20
        $region19: #{tpu_custom_call.1} parent=11 // pred_region
          _
        $region20: #{tpu_custom_call.1} parent=11 // pred_fallthru
          _
      $region12: #{tpu_custom_call.1} parent=5 // pred_fallthru
        _
      %p142 = scmp.lt.s32.totalorder %s16, 2
      // Predicated region
      $region21: #{tpu_custom_call.1} parent=5 // pred_check
        %p143 = pneg %p142
      $region22: #{tpu_custom_call.1} parent=5 // pred_check_branch
        %145 = sbr.rel (%p143) target = $region24
      $region23: #{tpu_custom_call.1} parent=5 // pred_region
        // Predicated region
        $region25: #{tpu_custom_call.1} parent=23 // pred_check
          %p146 = pneg %p36
        $region26: #{tpu_custom_call.1} parent=23 // pred_check_branch
          %148 = sbr.rel (%p146) target = $region28
        $region27: #{tpu_custom_call.1} parent=23 // pred_region
          %s149 = sand.u32 %s26, 1
          %s150 = scalar_lea.sflag [#allocation3], %s149
          %s151 = sand.u32 %s26, 1
          %s152 = smul.addr %s151, 36
          %s153 = scalar_lea.vmem [#allocation2], %s152
          %s154 = smul.u32 3, %s16
          %156 = vsyncadd %s150, 0
          %s157 = smul.addr %s154, 3
          %s158 = smul.addr %s157, 4
          %s159 = scalar_lea.hbm %s0, %s158
          %s160 = sshll.u32 %s159, 4
          %s161 = int_to_ptr.hbm [resolvable:$true] %s160
          %s162 = sshll.u32 %s153, 4
          %s163 = int_to_ptr.vmem [resolvable:$true] %s162
          %168 = dma.hbm_to_vmem [thread:$0]  %s161, 576, %s163, %s150, 64, 64, 4
        $region28: #{tpu_custom_call.1} parent=23 // pred_fallthru
          _
      $region24: #{tpu_custom_call.1} parent=5 // pred_fallthru
        _
      %p169 = scmp.le.s32.totalorder 1, %s16
      %p170 = scmp.lt.s32.totalorder %s16, 3
      %p171 = pnand %p169, %p170
      %p172 = pneg %p171
      // Predicated region
      $region29: #{tpu_custom_call.1} parent=5 // pred_check
        _
      $region30: #{tpu_custom_call.1} parent=5 // pred_check_branch
        %174 = sbr.rel (%p171) target = $region32
      $region31: #{tpu_custom_call.1} parent=5 // pred_region
        %s175 = ssub.s32 %s16, 1
        %s176 = sand.u32 %s29, 1
        %s177 = scalar_lea.sflag [#allocation3], %s176
        %s178 = sand.u32 %s29, 1
        %s179 = smul.addr %s178, 36
        %s180 = scalar_lea.vmem [#allocation2], %s179
        // Predicated region
        $region33: #{tpu_custom_call.1} parent=31 // pred_check
          %p181 = pneg %p42
        $region34: #{tpu_custom_call.1} parent=31 // pred_check_branch
          %183 = sbr.rel (%p181) target = $region36
        $region35: #{tpu_custom_call.1} parent=31 // pred_region
          %185 = dma.done %s177, 576
        $region36: #{tpu_custom_call.1} parent=31 // pred_fallthru
          _
        // Predicated region
        $region37: #{tpu_custom_call.1} parent=31 // pred_check
          %p186 = pneg %p63
        $region38: #{tpu_custom_call.1} parent=31 // pred_check_branch
          %188 = sbr.rel (%p186) target = $region40
        $region39: #{tpu_custom_call.1} parent=31 // pred_region
          %190 = dma.done [#allocation6], 1728
        $region40: #{tpu_custom_call.1} parent=31 // pred_fallthru
          _
        %s191 = sand.u32 %s29, 1
        %s192 = scalar_lea.sflag [#allocation3], %s191
        %s193 = sand.u32 %s29, 1
        %s194 = smul.addr %s193, 36
        %s195 = scalar_lea.vmem [#allocation2], %s194
        %p196 = pneg %p42
        %p197 = pneg %p39
        %p198 = pneg %p63
        %p199 = pneg %p60
        %p200 = pneg %p84
        %p201 = pneg %p81
        %p202 = pneg %p110
        %p203 = pneg %p107
        %s204 = sand.u32 %s97, 1
        %s205 = scalar_lea.sflag [#allocation4], %s204
        %s206 = sand.u32 %s97, 1
        %s207 = smul.addr %s206, 24
        %s208 = scalar_lea.vmem [#allocation7], %s207
        %s209 = smul.u32 3, %s21
        %s210 = smul.u32 3, %s21
        %v212 = vld [vmem:[%s180] sm:$0xf]
        %v213 = vld [vmem:[%s180 + $0x4] sm:$0xf]
        %v214 = vld [vmem:[%s180 + $0xc] sm:$0xf]
        %v215 = vld [vmem:[%s180 + $0x10] sm:$0xf]
        %v216 = vld [vmem:[%s180 + $0x18] sm:$0xf]
        %v217 = vld [vmem:[%s180 + $0x1c] sm:$0xf]
        %v218 = vld [vmem:[#allocation5] sm:$0xf]
        %v219 = vld [vmem:[#allocation5 + $0x4] sm:$0xf]
        %v220 = vld [vmem:[#allocation5 + $0x8] sm:$0xf]
        %v221 = vld [vmem:[#allocation5 + $0xc] sm:$0xf]
        %v222 = vld [vmem:[#allocation5 + $0x10] sm:$0xf]
        %v223 = vld [vmem:[#allocation5 + $0x14] sm:$0xf]
        %v224 = vld [vmem:[#allocation5 + $0x18] sm:$0xf]
        %v225 = vld [vmem:[#allocation5 + $0x1c] sm:$0xf]
        %v226 = vld [vmem:[#allocation5 + $0x20] sm:$0xf]
        %v227 = vld [vmem:[%s180 + $0x8] sm:$0x1]
        %v228 = vld [vmem:[%s180 + $0x14] sm:$0x1]
        %v229 = vld [vmem:[%s180 + $0x20] sm:$0x1]
        %vm230 = vsmask.f32 3328
        %vm231 = vsmask.f32 7440
        %vm232 = vmor %vm230, %vm231
        %v234 = vshrl.u32 %v212, 16
        %v236 = vrot.slane %v234, 4
        %v237 = vshll.u32 %v212, 16
        %v239 = vrot.slane %v237, 5
        %v240 = vor.u32 %v236, %v239
        %v241 = vrot.slane %v240, 4
        %v243 = vshll.u32 %v213, 16
        %v245 = vrot.slane %v243, 5
        %v246 = vsel %vm232, %v241, %v245
        %v247 = vshrl.u32 %v213, 16
        %v249 = vrot.slane %v247, 4
        %v250 = vor.u32 %v249, %v245
        %v251 = vrot.slane %v250, 4
        %v253 = vshll.u32 %v227, 16
        %v255 = vrot.slane %v253, 5
        %v256 = vsel %vm232, %v251, %v255
        %v258 = vshrl.u32 %v214, 16
        %v260 = vrot.slane %v258, 4
        %v261 = vshll.u32 %v214, 16
        %v263 = vrot.slane %v261, 5
        %v264 = vor.u32 %v260, %v263
        %v265 = vrot.slane %v264, 4
        %v267 = vshll.u32 %v215, 16
        %v269 = vrot.slane %v267, 5
        %v270 = vsel %vm232, %v265, %v269
        %v271 = vshrl.u32 %v215, 16
        %v273 = vrot.slane %v271, 4
        %v274 = vor.u32 %v273, %v269
        %v275 = vrot.slane %v274, 4
        %v277 = vshll.u32 %v228, 16
        %v279 = vrot.slane %v277, 5
        %v280 = vsel %vm232, %v275, %v279
        %v282 = vshrl.u32 %v216, 16
        %v284 = vrot.slane %v282, 4
        %v285 = vshll.u32 %v216, 16
        %v287 = vrot.slane %v285, 5
        %v288 = vor.u32 %v284, %v287
        %v289 = vrot.slane %v288, 4
        %v291 = vshll.u32 %v217, 16
        %v293 = vrot.slane %v291, 5
        %v294 = vsel %vm232, %v289, %v293
        %v295 = vshrl.u32 %v217, 16
        %v297 = vrot.slane %v295, 4
        %v298 = vor.u32 %v297, %v293
        %v299 = vrot.slane %v298, 4
        %v301 = vshll.u32 %v229, 16
        %v303 = vrot.slane %v301, 5
        %v304 = vsel %vm232, %v299, %v303
        %s305 = scalar_lea.vmem [#allocation5], 36
        %v306 = vld [vmem:[%s305] sm:$0xf]
        %v307 = vld [vmem:[%s305 + $0x4] sm:$0xf]
        %v308 = vld [vmem:[%s305 + $0x8] sm:$0xf]
        %v309 = vld [vmem:[%s305 + $0xc] sm:$0xf]
        %v310 = vld [vmem:[%s305 + $0x10] sm:$0xf]
        %v311 = vld [vmem:[%s305 + $0x14] sm:$0xf]
        %v312 = vld [vmem:[%s305 + $0x18] sm:$0xf]
        %v313 = vld [vmem:[%s305 + $0x1c] sm:$0xf]
        %v314 = vld [vmem:[%s305 + $0x20] sm:$0xf]
        %v315 = vunpack.c.l.b16 %v246
        %v316 = vunpack.c.l.b16 %v256
        %v317 = vunpack.c.l.b16 %v270
        %v318 = vunpack.c.l.b16 %v280
        %v319 = vunpack.c.l.b16 %v294
        %v320 = vunpack.c.l.b16 %v304
        %v321 = vpack.c.b16 %v316, %v315
        %v322 = vpack.c.b16 %v318, %v317
        %v323 = vpack.c.b16 %v320, %v319
        %v333 = vunpack.c.l.b16 %v306
        %v334 = vunpack.c.l.b16 %v307
        %v335 = vunpack.c.l.b16 %v308
        %v336 = vunpack.c.l.b16 %v309
        %v337 = vunpack.c.l.b16 %v310
        %v338 = vunpack.c.l.b16 %v311
        %v339 = vunpack.c.l.b16 %v312
        %v340 = vunpack.c.l.b16 %v313
        %v341 = vunpack.c.l.b16 %v314
        %v342 = vpack.c.b16 %v334, %v333
        %v343 = vpack.c.b16 %v336, %v335
        %v344 = vpack.c.b16 %v338, %v337
        %v345 = vpack.c.b16 %v340, %v339
        %v346 = vpack.c.b16 %v341, %v341
        %vm351 = vcmask 588800
        %v353 = vsel %vm351, %v321, 0
        %v356 = vsel %vm351, %v322, 0
        %v359 = vsel %vm351, %v323, 0
        %vm361 = vcmask 1043456
        %v363 = vsel %vm361, %v346, 0
        %365 = vmatpush.bf16.msra.mxu0 0
        %366 = vmatpush.bf16.msra.mxu0 0
        %367 = vmatpush.bf16.msra.mxu0 0
        %368 = vmatpush.bf16.msra.mxu0 %v363
        %369 = vmatpush.bf16.msra.mxu0 %v345
        %370 = vmatpush.bf16.msra.mxu0 %v344
        %371 = vmatpush.bf16.msra.mxu0 %v343
        %372 = vmatpush.bf16.msra.mxu0 %v342
        %373 = vmatmul.bf16.gmra.mxu0 %v353
        %v374 = vpop.f32.mrf.mxu0
        %v375 = vadd.f32 0.0, %v374
        %v376 = vpop.f32.mrf.mxu0
        %v377 = vadd.f32 0.0, %v376
        %378 = vmatmul.bf16.gmra.mxu0 %v356
        %v379 = vpop.f32.mrf.mxu0
        %v380 = vadd.f32 0.0, %v379
        %v381 = vpop.f32.mrf.mxu0
        %v382 = vadd.f32 0.0, %v381
        %383 = vmatmul.bf16.gmra.mxu0 %v359
        %v384 = vpop.f32.mrf.mxu0
        %v385 = vadd.f32 0.0, %v384
        %v386 = vpop.f32.mrf.mxu0
        %v387 = vadd.f32 0.0, %v386
        %388 = vdwg.mxu0
        %v395 = vunpack.c.l.b16 %v212
        %v396 = vunpack.c.l.b16 %v213
        %v397 = vunpack.c.l.b16 %v214
        %v398 = vunpack.c.l.b16 %v215
        %v399 = vunpack.c.l.b16 %v216
        %v400 = vunpack.c.l.b16 %v217
        %v401 = vpack.c.b16 %v396, %v395
        %v402 = vpack.c.b16 %v398, %v397
        %v403 = vpack.c.b16 %v400, %v399
        %v413 = vunpack.c.l.b16 %v218
        %v414 = vunpack.c.l.b16 %v219
        %v415 = vunpack.c.l.b16 %v220
        %v416 = vunpack.c.l.b16 %v221
        %v417 = vunpack.c.l.b16 %v222
        %v418 = vunpack.c.l.b16 %v223
        %v419 = vunpack.c.l.b16 %v224
        %v420 = vunpack.c.l.b16 %v225
        %v421 = vunpack.c.l.b16 %v226
        %v422 = vpack.c.b16 %v414, %v413
        %v423 = vpack.c.b16 %v416, %v415
        %v424 = vpack.c.b16 %v418, %v417
        %v425 = vpack.c.b16 %v420, %v419
        %v426 = vpack.c.b16 %v421, %v421
        %v432 = vsel %vm351, %v401, 0
        %v435 = vsel %vm351, %v402, 0
        %v438 = vsel %vm351, %v403, 0
        %v441 = vsel %vm361, %v426, 0
        %443 = vmatpush.bf16.msra.mxu0 0
        %444 = vmatpush.bf16.msra.mxu0 0
        %445 = vmatpush.bf16.msra.mxu0 0
        %446 = vmatpush.bf16.msra.mxu0 %v441
        %447 = vmatpush.bf16.msra.mxu0 %v425
        %448 = vmatpush.bf16.msra.mxu0 %v424
        %449 = vmatpush.bf16.msra.mxu0 %v423
        %450 = vmatpush.bf16.msra.mxu0 %v422
        %451 = vmatmul.bf16.gmra.mxu0 %v432
        %v452 = vpop.f32.mrf.mxu0
        %v453 = vadd.f32 %v375, %v452
        %v454 = vpop.f32.mrf.mxu0
        %v455 = vadd.f32 %v377, %v454
        %456 = vmatmul.bf16.gmra.mxu0 %v435
        %v457 = vpop.f32.mrf.mxu0
        %v458 = vadd.f32 %v380, %v457
        %v459 = vpop.f32.mrf.mxu0
        %v460 = vadd.f32 %v382, %v459
        %461 = vmatmul.bf16.gmra.mxu0 %v438
        %v462 = vpop.f32.mrf.mxu0
        %v463 = vadd.f32 %v385, %v462
        %v464 = vpop.f32.mrf.mxu0
        %v465 = vadd.f32 %v387, %v464
        %466 = vdwg.mxu0
        %v467 = vld [vmem:[%s180] sm:$0xe]
        %v468 = vld [vmem:[%s180 + $0xc] sm:$0xe]
        %v469 = vld [vmem:[%s180 + $0x18] sm:$0xe]
        %vm476 = vcmask 1042432
        %vm477 = vcmask 1046532
        %vm478 = vmor %vm476, %vm477
        %v479 = vrot.slane %v467, 5
        %v480 = vrot.slane %v479, 4
        %v481 = vrot.slane %v213, 5
        %v482 = vsel %vm478, %v480, %v481
        %v483 = vrot.slane %v481, 4
        %v484 = vrot.slane %v227, 5
        %v485 = vsel %vm478, %v483, %v484
        %v486 = vrot.slane %v468, 5
        %v487 = vrot.slane %v486, 4
        %v488 = vrot.slane %v215, 5
        %v489 = vsel %vm478, %v487, %v488
        %v490 = vrot.slane %v488, 4
        %v491 = vrot.slane %v228, 5
        %v492 = vsel %vm478, %v490, %v491
        %v493 = vrot.slane %v469, 5
        %v494 = vrot.slane %v493, 4
        %v495 = vrot.slane %v217, 5
        %v496 = vsel %vm478, %v494, %v495
        %v497 = vrot.slane %v495, 4
        %v498 = vrot.slane %v229, 5
        %v499 = vsel %vm478, %v497, %v498
        %s500 = scalar_lea.vmem [#allocation5], 72
        %v501 = vld [vmem:[%s500] sm:$0xf]
        %v502 = vld [vmem:[%s500 + $0x4] sm:$0xf]
        %v503 = vld [vmem:[%s500 + $0x8] sm:$0xf]
        %v504 = vld [vmem:[%s500 + $0xc] sm:$0xf]
        %v505 = vld [vmem:[%s500 + $0x10] sm:$0xf]
        %v506 = vld [vmem:[%s500 + $0x14] sm:$0xf]
        %v507 = vld [vmem:[%s500 + $0x18] sm:$0xf]
        %v508 = vld [vmem:[%s500 + $0x1c] sm:$0xf]
        %v509 = vld [vmem:[%s500 + $0x20] sm:$0xf]
        %v510 = vunpack.c.l.b16 %v482
        %v511 = vunpack.c.l.b16 %v485
        %v512 = vunpack.c.l.b16 %v489
        %v513 = vunpack.c.l.b16 %v492
        %v514 = vunpack.c.l.b16 %v496
        %v515 = vunpack.c.l.b16 %v499
        %v516 = vpack.c.b16 %v511, %v510
        %v517 = vpack.c.b16 %v513, %v512
        %v518 = vpack.c.b16 %v515, %v514
        %v528 = vunpack.c.l.b16 %v501
        %v529 = vunpack.c.l.b16 %v502
        %v530 = vunpack.c.l.b16 %v503
        %v531 = vunpack.c.l.b16 %v504
        %v532 = vunpack.c.l.b16 %v505
        %v533 = vunpack.c.l.b16 %v506
        %v534 = vunpack.c.l.b16 %v507
        %v535 = vunpack.c.l.b16 %v508
        %v536 = vunpack.c.l.b16 %v509
        %v537 = vpack.c.b16 %v529, %v528
        %v538 = vpack.c.b16 %v531, %v530
        %v539 = vpack.c.b16 %v533, %v532
        %v540 = vpack.c.b16 %v535, %v534
        %v541 = vpack.c.b16 %v536, %v536
        %v547 = vsel %vm351, %v516, 0
        %v550 = vsel %vm351, %v517, 0
        %v553 = vsel %vm351, %v518, 0
        %v556 = vsel %vm361, %v541, 0
        %558 = vmatpush.bf16.msra.mxu0 0
        %559 = vmatpush.bf16.msra.mxu0 0
        %560 = vmatpush.bf16.msra.mxu0 0
        %561 = vmatpush.bf16.msra.mxu0 %v556
        %562 = vmatpush.bf16.msra.mxu0 %v540
        %563 = vmatpush.bf16.msra.mxu0 %v539
        %564 = vmatpush.bf16.msra.mxu0 %v538
        %565 = vmatpush.bf16.msra.mxu0 %v537
        %566 = vmatmul.bf16.gmra.mxu0 %v547
        %v567 = vpop.f32.mrf.mxu0
        %v568 = vadd.f32 0.0, %v567
        %v569 = vpop.f32.mrf.mxu0
        %v570 = vadd.f32 0.0, %v569
        %571 = vmatmul.bf16.gmra.mxu0 %v550
        %v572 = vpop.f32.mrf.mxu0
        %v573 = vadd.f32 0.0, %v572
        %v574 = vpop.f32.mrf.mxu0
        %v575 = vadd.f32 0.0, %v574
        %576 = vmatmul.bf16.gmra.mxu0 %v553
        %v577 = vpop.f32.mrf.mxu0
        %v578 = vadd.f32 0.0, %v577
        %v579 = vpop.f32.mrf.mxu0
        %v580 = vadd.f32 0.0, %v579
        %581 = vdwg.mxu0
        %v582 = vadd.f32 %v453, %v568
        %v583 = vadd.f32 %v455, %v570
        %v584 = vadd.f32 %v458, %v573
        %v585 = vadd.f32 %v460, %v575
        %v586 = vadd.f32 %v463, %v578
        %v587 = vadd.f32 %v465, %v580
        %v588 = vld [vmem:[%s2] sm:$0x1]
        %v590 = vperm.slane %v588, 0
        %v592 = vadd.f32 %v582, %v590
        %v593 = vadd.f32 %v583, %v590
        %v594 = vadd.f32 %v584, %v590
        %v595 = vadd.f32 %v585, %v590
        %v596 = vadd.f32 %v586, %v590
        %v597 = vadd.f32 %v587, %v590
        %v598 = vpack.c.bf16 %v592, %v592
        %v599 = vpack.c.bf16 %v593, %v593
        %v600 = vpack.c.bf16 %v594, %v594
        %v601 = vpack.c.bf16 %v595, %v595
        %v602 = vpack.c.bf16 %v596, %v596
        %v603 = vpack.c.bf16 %v597, %v597
        %604 = vst [vmem:[%s208] sm:$0xf] %v598
        %605 = vst [vmem:[%s208 + $0x4] sm:$0xf] %v599
        %606 = vst [vmem:[%s208 + $0x8] sm:$0xf] %v600
        %607 = vst [vmem:[%s208 + $0xc] sm:$0xf] %v601
        %608 = vst [vmem:[%s208 + $0x10] sm:$0xf] %v602
        %609 = vst [vmem:[%s208 + $0x14] sm:$0xf] %v603
        %s610 = sand.u32 %s97, 1
        %s611 = scalar_lea.sflag [#allocation4], %s610
        %s612 = sand.u32 %s97, 1
        %s613 = smul.addr %s612, 24
        %s614 = scalar_lea.vmem [#allocation7], %s613
        // Predicated region
        $region41: #{tpu_custom_call.1} parent=31 // pred_check
          %p615 = pneg %p107
        $region42: #{tpu_custom_call.1} parent=31 // pred_check_branch
          %617 = sbr.rel (%p615) target = $region44
        $region43: #{tpu_custom_call.1} parent=31 // pred_region
          %s618 = smul.u32 3, %s21
          %620 = vsyncadd %s611, 0
          %s621 = smul.addr %s618, 2
          %s622 = smul.addr %s621, 4
          %s623 = scalar_lea.hbm %s3, %s622
          %s624 = sshll.u32 %s614, 4
          %s625 = int_to_ptr.vmem [resolvable:$true] %s624
          %s626 = sshll.u32 %s623, 4
          %s627 = int_to_ptr.hbm [resolvable:$true] %s626
          %632 = dma.vmem_to_hbm [thread:$0]  %s625, 384, %s627, %s611, 64, 64, 4
        $region44: #{tpu_custom_call.1} parent=31 // pred_fallthru
          _
      $region32: #{tpu_custom_call.1} parent=5 // pred_fallthru
        _
      %p633 = scmp.le.s32.totalorder 2, %s16
      // Predicated region
      $region45: #{tpu_custom_call.1} parent=5 // pred_check
        %p634 = pneg %p633
      $region46: #{tpu_custom_call.1} parent=5 // pred_check_branch
        %636 = sbr.rel (%p634) target = $region48
      $region47: #{tpu_custom_call.1} parent=5 // pred_region
        %s637 = ssub.s32 %s16, 2
        // Predicated region
        $region49: #{tpu_custom_call.1} parent=47 // pred_check
          %p638 = pneg %p113
        $region50: #{tpu_custom_call.1} parent=47 // pred_check_branch
          %640 = sbr.rel (%p638) target = $region52
        $region51: #{tpu_custom_call.1} parent=47 // pred_region
          %s641 = sand.u32 %s98, 1
          %s642 = scalar_lea.sflag [#allocation4], %s641
          %s643 = sand.u32 %s98, 1
          %s644 = smul.addr %s643, 24
          %s645 = scalar_lea.vmem [#allocation7], %s644
          %647 = dma.done %s642, 384
        $region52: #{tpu_custom_call.1} parent=47 // pred_fallthru
          _
      $region48: #{tpu_custom_call.1} parent=5 // pred_fallthru
        _
    $region6: #{tpu_custom_call.1} parent=1 // loop_footer
      %s20 = sadd.s32 1, %s16
    $region7: #{tpu_custom_call.1} parent=1 // loop_footer_branch
      %15 = sbr.rel target = $region3
    $region8: #{tpu_custom_call.1} parent=1 // loop_exit
      _
    %648 = vsyncpa [#allocation3], 1
    %s649 = scalar_lea.sflag [#allocation3], 1
    %650 = vsyncpa %s649, 1
    %651 = vsyncpa [#allocation6], 1
    %652 = vsyncpa [#allocation4], 1
    %s653 = scalar_lea.sflag [#allocation4], 1
    %654 = vsyncpa %s653, 1

</llo_original>
